<compile_context>
chip_gen: v6e
topology: v6e:2x2x1
jax: 0.10.0
libtpu: 0.0.40
codegen_flags: <defaults>
</compile_context>

<pallas_src>
import math
from functools import partial

import jax
import jax.numpy as jnp
import numpy as np
from jax.experimental import pallas as pl
from jax.experimental.pallas import tpu as pltpu

_SQRT2 = 1.4142135623730951
_NEG_SLOPE_SQRT2 = 0.2 * _SQRT2


def _round_up(x, m):
    return ((x + m - 1) // m) * m


def _vmem_capacity_bytes():
    try:
        info = pltpu.get_tpu_info()
        cap = getattr(info, "vmem_capacity_bytes", None)
        if cap:
            return int(cap)
    except Exception:
        pass
    return 64 * 1024 * 1024  # conservative fallback (v7x per-TensorCore VMEM)


def _epilogue(acc_f32, b_ref, *, scale, lr_mul, activation):
    out = acc_f32 * scale
    if b_ref is not None:
        out = out + b_ref[...].astype(jnp.float32) * lr_mul
    if activation:
        # fused_leaky_relu with sqrt(2) folded into the branch constants.
        out = jnp.where(out >= 0.0, _SQRT2 * out, _NEG_SLOPE_SQRT2 * out)
    return out


# ---------- single K-step kernels: no accumulator, epilogue fused on the dot result ----------
def _el_single_bias(x_ref, w_ref, b_ref, o_ref, *, scale, lr_mul, activation):
    acc = jnp.dot(x_ref[...], w_ref[...], preferred_element_type=jnp.float32)
    o_ref[...] = _epilogue(acc, b_ref, scale=scale, lr_mul=lr_mul,
                           activation=activation).astype(o_ref.dtype)


def _el_single_nobias(x_ref, w_ref, o_ref, *, scale):
    acc = jnp.dot(x_ref[...], w_ref[...], preferred_element_type=jnp.float32)
    o_ref[...] = (acc * scale).astype(o_ref.dtype)


# ---------- multi K-step kernels: f32 VMEM accumulator; k==0 writes the dot directly ----------
def _el_multi_bias(x_ref, w_ref, b_ref, o_ref, acc_ref, *, scale, lr_mul, activation):
    k = pl.program_id(2)
    prod = jnp.dot(x_ref[...], w_ref[...], preferred_element_type=jnp.float32)

    @pl.when(k == 0)
    def _():
        acc_ref[...] = prod

    @pl.when(k > 0)
    def _():
        acc_ref[...] += prod

    @pl.when(k == pl.num_programs(2) - 1)
    def _():
        o_ref[...] = _epilogue(acc_ref[...], b_ref, scale=scale, lr_mul=lr_mul,
                               activation=activation).astype(o_ref.dtype)


def _el_multi_nobias(x_ref, w_ref, o_ref, acc_ref, *, scale):
    k = pl.program_id(2)
    prod = jnp.dot(x_ref[...], w_ref[...], preferred_element_type=jnp.float32)

    @pl.when(k == 0)
    def _():
        acc_ref[...] = prod

    @pl.when(k > 0)
    def _():
        acc_ref[...] += prod

    @pl.when(k == pl.num_programs(2) - 1)
    def _():
        o_ref[...] = (acc_ref[...] * scale).astype(o_ref.dtype)


def equal_linear(x, weight, bias=None, *, lr_mul=1.0, w=1.0, activation=None,
                 allow_bf16=False, tm=None, tn=None, tk=None):
    """Pallas EqualLinear forward.

    x:      (B, in_dim)              float32
    weight: (out_dim, in_dim)        float32 (PyTorch layout)
    bias:   (out_dim,) float32 or None
    allow_bf16: cast operands to bf16 (f32 MXU accumulation, f32 epilogue).
    """
    B, in_dim = x.shape
    out_dim, k_dim = weight.shape
    assert k_dim == in_dim
    if activation is not None:
        assert bias is not None, "fused_leaky_relu path requires a bias (matches PyTorch assert)"
    scale = w / math.sqrt(in_dim) * lr_mul

    compute_dtype = jnp.bfloat16 if allow_bf16 else x.dtype
    in_bytes = jnp.dtype(compute_dtype).itemsize
    out_dtype = x.dtype
    out_bytes = jnp.dtype(out_dtype).itemsize
    sub = 16 if in_bytes == 2 else 8  # sublane granularity of the operand dtype

    # One-time wrapper-side relayout: (out_dim, in_dim) -> (K, N), plus optional bf16 cast.
    # Callers that reuse the weight across calls can hoist/cache this outside.
    xc = x.astype(compute_dtype)
    w_kn = weight.T.astype(compute_dtype)

    # ------------------------------ tile selection ------------------------------
    vmem_cap = _vmem_capacity_bytes()
    budget = min(int(vmem_cap * 0.55), 72 << 20)   # ~35 MiB on v7x, up to ~70 MiB on v5e/v6e

    # N: full output strip when modest (x streamed from HBM once); else 512-wide tiles.
    if tn is None:
        tn = out_dim if out_dim <= 1024 else 512
    else:
        tn = min(tn, out_dim)
    if tn != out_dim:
        tn = max(128, (tn // 128) * 128)           # lane-aligned tiled N (ragged edge OK)

    # K: single step (no accumulator, no padding) when it fits comfortably.
    if tk is None:
        tk = in_dim if in_dim <= 2048 else 1024
    else:
        tk = min(tk, in_dim)
    single_k = tk >= in_dim
    if single_k:
        tk = in_dim
    else:
        tk = max(128, (tk // 128) * 128)

    # M: whole batch when small (no padding, no ragged edge), else sublane-aligned tiles.
    if tm is None:
        tm = 512
    if B <= tm:
        tm = B
    else:
        tm = max(sub, (tm // sub) * sub)

    has_bias = bias is not None

    def _footprint(tm_, tn_, tk_, single_):
        fp = 2 * (tm_ * tk_ + tk_ * tn_) * in_bytes   # double-buffered operand tiles
        fp += 2 * tm_ * tn_ * out_bytes               # double-buffered output tile
        if not single_:
            fp += tm_ * tn_ * 4                       # f32 accumulator scratch
        if has_bias:
            fp += 2 * tn_ * 4
        return fp

    # Shrink tiles until the working set fits the per-generation VMEM budget.
    while _footprint(tm, tn, tk, single_k) > budget:
        if (not single_k) and tk > 512:
            tk //= 2
        elif tm >= 512:
            tm = max(sub, ((tm // 2) // sub) * sub)
        elif tn >= 512 and tn % 256 == 0:
            tn //= 2
        elif (not single_k) and tk > 128:
            tk //= 2
        elif tm > sub:
            tm = max(sub, ((tm // 2) // sub) * sub)
        else:
            break

    # v7x megacore: if the parallel part of the grid would be a single block, split N so
    # both TensorCores get work (harmless on single-TC v5e/v6e).
    if pl.cdiv(B, tm) * pl.cdiv(out_dim, tn) == 1 and tn >= 256 and tn % 256 == 0:
        tn //= 2

    # K must be explicitly zero-padded to a multiple of tk when the reduction is tiled —
    # garbage in an out-of-bounds K block would corrupt valid outputs. B/N edges need no
    # padding: OOB contributions only land in rows/cols outside the output array.
    pK = in_dim if single_k else _round_up(in_dim, tk)
    if pK != in_dim:
        xc = jnp.pad(xc, ((0, 0), (0, pK - in_dim)))
        w_kn = jnp.pad(w_kn, ((0, pK - in_dim), (0, 0)))

    grid_i = pl.cdiv(B, tm)
    grid_j = pl.cdiv(out_dim, tn)
    grid_k = pK // tk

    if has_bias:
        bias2d = bias.reshape(1, out_dim)

    # Streamed-bytes estimate: x re-read once per N strip, W once per M strip.
    cost = pl.CostEstimate(
        flops=2 * B * out_dim * pK,
        transcendentals=0,
        bytes_accessed=(in_bytes * (B * pK * grid_j + pK * out_dim * grid_i)
                        + out_bytes * B * out_dim
                        + (4 * out_dim if has_bias else 0)),
    )

    fp = _footprint(tm, tn, tk, single_k)
    vmem_limit = int(min(vmem_cap, max(fp + (8 << 20), 32 << 20)))

    if single_k:
        dims = ("parallel", "parallel")
        grid = (grid_i, grid_j)
        scratch = []
        out_idx = lambda i, j: (i, j)
        if has_bias:
            kernel = partial(_el_single_bias, scale=scale, lr_mul=lr_mul,
                             activation=(activation is not None))
            in_specs = [
                pl.BlockSpec((tm, pK), lambda i, j: (i, 0)),
                pl.BlockSpec((pK, tn), lambda i, j: (0, j)),
                pl.BlockSpec((1, tn), lambda i, j: (0, j)),
            ]
            args = (xc, w_kn, bias2d)
        else:
            kernel = partial(_el_single_nobias, scale=scale)
            in_specs = [
                pl.BlockSpec((tm, pK), lambda i, j: (i, 0)),
                pl.BlockSpec((pK, tn), lambda i, j: (0, j)),
            ]
            args = (xc, w_kn)
    else:
        dims = ("parallel", "parallel", "arbitrary")
        grid = (grid_i, grid_j, grid_k)
        scratch = [pltpu.VMEM((tm, tn), jnp.float32)]
        out_idx = lambda i, j, k: (i, j)
        if has_bias:
            kernel = partial(_el_multi_bias, scale=scale, lr_mul=lr_mul,
                             activation=(activation is not None))
            in_specs = [
                pl.BlockSpec((tm, tk), lambda i, j, k: (i, k)),
                pl.BlockSpec((tk, tn), lambda i, j, k: (k, j)),
                pl.BlockSpec((1, tn), lambda i, j, k: (0, j)),
            ]
            args = (xc, w_kn, bias2d)
        else:
            kernel = partial(_el_multi_nobias, scale=scale)
            in_specs = [
                pl.BlockSpec((tm, tk), lambda i, j, k: (i, k)),
                pl.BlockSpec((tk, tn), lambda i, j, k: (k, j)),
            ]
            args = (xc, w_kn)

    cparams = pltpu.CompilerParams(dimension_semantics=dims,
                                   vmem_limit_bytes=vmem_limit)

    out = pl.pallas_call(
        kernel,
        out_shape=jax.ShapeDtypeStruct((B, out_dim), out_dtype),
        grid_spec=pltpu.PrefetchScalarGridSpec(
            num_scalar_prefetch=0,
            grid=grid,
            in_specs=in_specs,
            out_specs=pl.BlockSpec((tm, tn), out_idx),
            scratch_shapes=scratch,
        ),
        compiler_params=cparams,
        cost_estimate=cost,
    )(*args)

    return out


def _ref_equal_linear(x, weight, bias, *, lr_mul=1.0, w=1.0, activation=None):
    scale = w / math.sqrt(x.shape[-1]) * lr_mul
    out = x @ (weight * scale).T
    b = (bias * lr_mul) if bias is not None else 0.0
    out = out + b
    if activation:
        out = jnp.where(out >= 0, out, 0.2 * out) * math.sqrt(2.0)
    return out


if __name__ == "__main__":
    key = jax.random.PRNGKey(0)
    k1, k2, k3, k4, k5, k6, k7 = jax.random.split(key, 7)

    # --- Test 1: small StyleGAN-style mapping layer, bias, both activation modes.
    #     Hits the single-K-step kernel with full-dim blocks (no padding, no accumulator).
    B1, K1, N1 = 8, 32, 32
    lr_mul = 0.01
    w1 = jax.random.normal(k1, (N1, K1), dtype=jnp.float32) / lr_mul
    b1 = jnp.full((N1,), 0.1, dtype=jnp.float32)
    x1 = jax.random.normal(k2, (B1, K1), dtype=jnp.float32)

    out_lin = jax.block_until_ready(equal_linear(x1, w1, b1, lr_mul=lr_mul, activation=None))
    out_act = jax.block_until_ready(equal_linear(x1, w1, b1, lr_mul=lr_mul,
                                                 activation="fused_lrelu"))
    ref_lin = _ref_equal_linear(x1, w1, b1, lr_mul=lr_mul, activation=None)
    ref_act = _ref_equal_linear(x1, w1, b1, lr_mul=lr_mul, activation="fused_lrelu")
    assert np.allclose(np.asarray(out_lin), np.asarray(ref_lin), atol=1e-5, rtol=1e-5)
    assert np.allclose(np.asarray(out_act), np.asarray(ref_act), atol=1e-5, rtol=1e-5)

    # --- Test 2: forces the tiled-K reduction path (tk=512 < K) and the bias=None kernel,
    #     plus the megacore N split (parallel grid becomes 1x2).
    B2, K2, N2 = 64, 1024, 256
    w2 = jax.random.normal(k3, (N2, K2), dtype=jnp.float32)
    x2 = jax.random.normal(k4, (B2, K2), dtype=jnp.float32)
    out2 = jax.block_until_ready(equal_linear(x2, w2, None, activation=None, tk=512))
    ref2 = _ref_equal_linear(x2, w2, None, activation=None)
    assert np.allclose(np.asarray(out2), np.asarray(ref2), atol=1e-4, rtol=1e-4)

    # --- Test 3: non-(8,128)-aligned shapes handled without any padding (full-dim blocks).
    B3, K3, N3 = 20, 96, 72
    w3 = jax.random.normal(k5, (N3, K3), dtype=jnp.float32)
    b3 = 0.1 * jax.random.normal(k6, (N3,), dtype=jnp.float32)
    x3 = jax.random.normal(k7, (B3, K3), dtype=jnp.float32)
    out3 = jax.block_until_ready(equal_linear(x3, w3, b3, activation="fused_lrelu"))
    ref3 = _ref_equal_linear(x3, w3, b3, activation="fused_lrelu")
    assert np.allclose(np.asarray(out3), np.asarray(ref3), atol=1e-5, rtol=1e-5)

    # --- Test 4: bf16 operands with f32 accumulation (looser tolerance: input rounding only).
    out4 = jax.block_until_ready(equal_linear(x2, w2, None, activation=None, allow_bf16=True))
    assert np.allclose(np.asarray(out4), np.asarray(ref2), atol=1e-1, rtol=5e-2)

    print("KERNEL_OK")
</pallas_src>

<mosaic_0001>
module attributes {stable_mosaic.version = 11 : i64} {
  func.func @_el_single_bias(%arg0: i32, %arg1: i32, %arg2: memref<8x32xf32, #tpu.memory_space<vmem>>, %arg3: memref<32x32xf32, #tpu.memory_space<vmem>>, %arg4: memref<1x32xf32, #tpu.memory_space<vmem>>, %arg5: memref<8x32xf32, #tpu.memory_space<vmem>>) attributes {dimension_semantics = [#tpu.dimension_semantics<parallel>, #tpu.dimension_semantics<parallel>], iteration_bounds = array<i64: 1, 1>, scalar_prefetch = 0 : i64, scratch_operands = 0 : i64, tpu.core_type = #tpu.core_type<tc>, window_params = [{transform_indices = @transform_0, window_bounds = array<i64: 8, 32>}, {transform_indices = @transform_1, window_bounds = array<i64: 32, 32>}, {transform_indices = @transform_2, window_bounds = array<i64: 1, 32>}, {transform_indices = @transform_3, window_bounds = array<i64: 8, 32>}]} {
    %c0 = arith.constant 0 : index
    %c0_0 = arith.constant 0 : index
    %0 = vector.load %arg2[%c0, %c0_0] : memref<8x32xf32, #tpu.memory_space<vmem>>, vector<8x32xf32>
    %c0_1 = arith.constant 0 : index
    %c0_2 = arith.constant 0 : index
    %1 = vector.load %arg3[%c0_1, %c0_2] : memref<32x32xf32, #tpu.memory_space<vmem>>, vector<32x32xf32>
    %cst = arith.constant dense<0.000000e+00> : vector<8x32xf32>
    %2 = tpu.matmul %0, %1, %cst {dimension_numbers = #tpu.dot_dimension_numbers<[1], [0], [0], [1], [0, 0, 1, 1], [], []>} : vector<8x32xf32>, vector<32x32xf32>, vector<8x32xf32> -> vector<8x32xf32>
    %cst_3 = arith.constant 0.00176776689 : f32
    %3 = vector.broadcast %cst_3 : f32 to vector<8x32xf32>
    %4 = arith.mulf %2, %3 : vector<8x32xf32>
    %c0_4 = arith.constant 0 : index
    %c0_5 = arith.constant 0 : index
    %5 = vector.load %arg4[%c0_4, %c0_5] : memref<1x32xf32, #tpu.memory_space<vmem>>, vector<1x32xf32>
    %cst_6 = arith.constant 0.00999999977 : f32
    %6 = vector.broadcast %cst_6 : f32 to vector<1x32xf32>
    %7 = arith.mulf %5, %6 : vector<1x32xf32>
    %8 = vector.broadcast %7 : vector<1x32xf32> to vector<8x32xf32>
    %9 = arith.addf %4, %8 : vector<8x32xf32>
    %c0_7 = arith.constant 0 : index
    %c0_8 = arith.constant 0 : index
    %10 = vector.load %arg5[%c0_7, %c0_8] : memref<8x32xf32, #tpu.memory_space<vmem>>, vector<8x32xf32>
    tpu.vector_store %arg5[%c0_7, %c0_8], %9 {strides = array<i32>} : memref<8x32xf32, #tpu.memory_space<vmem>>, vector<8x32xf32>,
    return
  }
  func.func @transform_0(%arg0: i32, %arg1: i32) -> (i32, i32) {
    %c0_i32 = arith.constant 0 : i32
    %c0_i32_0 = arith.constant 0 : i32
    return %arg0, %c0_i32 : i32, i32
  }
  func.func @transform_1(%arg0: i32, %arg1: i32) -> (i32, i32) {
    %c0_i32 = arith.constant 0 : i32
    %c0_i32_0 = arith.constant 0 : i32
    return %c0_i32, %arg1 : i32, i32
  }
  func.func @transform_2(%arg0: i32, %arg1: i32) -> (i32, i32) {
    %c0_i32 = arith.constant 0 : i32
    %c0_i32_0 = arith.constant 0 : i32
    return %c0_i32, %arg1 : i32, i32
  }
  func.func @transform_3(%arg0: i32, %arg1: i32) -> (i32, i32) {
    %c0_i32 = arith.constant 0 : i32
    return %arg0, %arg1 : i32, i32
  }
}

</mosaic_0001>

<llo_original>
// kernel: tpu_custom_call.1
$region0: #{tpu_custom_call.1}
  #allocation0 [shape = 'u32[]', space=smem, size = 0x4, offset = 0x4, fixed_abs, tag = 'smem constant byte address 0x4 - core index']
  #allocation1 [shape = 'u32[144,128]{1,0:T(1,128)}', space=vmem, size = 0x12000, scoped, tag = 'internal scratch']
  %s0 = inlined_call_operand.hbm [shape: f32[8,32], index: 0, kind: input, shape index: {}]
  %s1 = inlined_call_operand.hbm [shape: f32[32,32], index: 1, kind: input, shape index: {}]
  %s2 = inlined_call_operand.vmem [shape: f32[1,32], index: 2, kind: input, shape index: {}]
  %s3 = inlined_call_operand.hbm [shape: f32[8,32], index: 3, kind: output, shape index: {}]
  %s4 = sld [smem:[#allocation0]]
  $region30: #{tpu_custom_call.1} parent=0
    _
  %s6 = ssub.s32 1, %s4
  %s7 = scalar_select 0, %s6, %s4
  $region1: #{tpu_custom_call.1} parent=0
    #allocation2 [shape = 'u8[4096]{0}', space=vmem, size = 0x1000, scoped, tag = 'input window, operand 0, single buffered']
    #allocation3 [shape = 's32[1]{0}', space=sflag, size = 0x4, scoped, tag = 'scoped memory for tpu_custom_call.1']
    #allocation4 [shape = 's32[1]{0}', space=sflag, size = 0x4, scoped, tag = 'scoped memory for tpu_custom_call.1']
    #allocation5 [shape = 'u8[16384]{0}', space=vmem, size = 0x4000, scoped, tag = 'input window, operand 1, single buffered']
    #allocation6 [shape = 's32[1]{0}', space=sflag, size = 0x4, scoped, tag = 'scoped memory for tpu_custom_call.1']
    #allocation7 [shape = 'u8[4096]{0}', space=vmem, size = 0x1000, scoped, tag = 'output window, operand 0, single buffered']
    %8 = vsyncpa [#allocation3], 0
    %9 = vsyncpa [#allocation6], 0
    %10 = vsyncpa [#allocation4], 0
    // Predicated region
    $region2: #{tpu_custom_call.1} parent=1 // pred_check
      _
    $region3: #{tpu_custom_call.1} parent=1 // pred_check_branch
      %12 = sbr.rel (0) target = $region5
    $region4: #{tpu_custom_call.1} parent=1 // pred_region
      %s14 = ssub.s32 128, 128
      %15 = vsyncadd [#allocation3], %s14
      %s17 = sshll.u32 [#allocation2], 4
      %s18 = int_to_ptr.vmem [resolvable:$true] %s17
      %20 = dma.hbm_to_vmem [thread:$0]  %s0, 128, %s18, [#allocation3]
    $region5: #{tpu_custom_call.1} parent=1 // pred_fallthru
      _
    // Predicated region
    $region6: #{tpu_custom_call.1} parent=1 // pred_check
      _
    $region7: #{tpu_custom_call.1} parent=1 // pred_check_branch
      %22 = sbr.rel (0) target = $region9
    $region8: #{tpu_custom_call.1} parent=1 // pred_region
      %s24 = ssub.s32 512, 512
      %25 = vsyncadd [#allocation6], %s24
      %s26 = sshll.u32 [#allocation5], 4
      %s27 = int_to_ptr.vmem [resolvable:$true] %s26
      %32 = dma.hbm_to_vmem [thread:$0]  %s1, 512, %s27, [#allocation6], 128, 128, 8
    $region9: #{tpu_custom_call.1} parent=1 // pred_fallthru
      _
    // Predicated region
    $region10: #{tpu_custom_call.1} parent=1 // pred_check
      _
    $region11: #{tpu_custom_call.1} parent=1 // pred_check_branch
      %34 = sbr.rel (0) target = $region13
    $region12: #{tpu_custom_call.1} parent=1 // pred_region
      _
    $region13: #{tpu_custom_call.1} parent=1 // pred_fallthru
      _
    // Predicated region
    $region14: #{tpu_custom_call.1} parent=1 // pred_check
      _
    $region15: #{tpu_custom_call.1} parent=1 // pred_check_branch
      %36 = sbr.rel (0) target = $region17
    $region16: #{tpu_custom_call.1} parent=1 // pred_region
      %37 = dma.done [#allocation3], 128
    $region17: #{tpu_custom_call.1} parent=1 // pred_fallthru
      _
    // Predicated region
    $region18: #{tpu_custom_call.1} parent=1 // pred_check
      _
    $region19: #{tpu_custom_call.1} parent=1 // pred_check_branch
      %39 = sbr.rel (0) target = $region21
    $region20: #{tpu_custom_call.1} parent=1 // pred_region
      %40 = dma.done [#allocation6], 512
    $region21: #{tpu_custom_call.1} parent=1 // pred_fallthru
      _
    %v41 = vld [vmem:[#allocation2] sm:$0xff]
    %v42 = vld [vmem:[#allocation5] sm:$0xff]
    %v43 = vld [vmem:[#allocation5 + $0x8] sm:$0xff]
    %v44 = vld [vmem:[#allocation5 + $0x10] sm:$0xff]
    %v45 = vld [vmem:[#allocation5 + $0x18] sm:$0xff]
    %vm46 = vcmask 261120
    %v48 = vsel %vm46, %v41, 0
    %50 = vmatprep.subr.mxu0 0.0
    %51 = vmatpush1.msra.mxu0 0.0
    %52 = vmatprep.subr.mxu0 0.0
    %53 = vmatpush1.msra.mxu0 0.0
    %54 = vmatprep.subr.mxu0 0.0
    %55 = vmatpush1.msra.mxu0 0.0
    %56 = vmatprep.subr.mxu0 0.0
    %57 = vmatpush1.msra.mxu0 0.0
    %58 = vmatprep.subr.mxu0 0.0
    %59 = vmatpush1.msra.mxu0 0.0
    %60 = vmatprep.subr.mxu0 0.0
    %61 = vmatpush1.msra.mxu0 0.0
    %62 = vmatprep.subr.mxu0 0.0
    %63 = vmatpush1.msra.mxu0 0.0
    %64 = vmatprep.subr.mxu0 0.0
    %65 = vmatpush1.msra.mxu0 0.0
    %66 = vmatprep.subr.mxu0 0.0
    %67 = vmatpush1.msra.mxu0 0.0
    %68 = vmatprep.subr.mxu0 0.0
    %69 = vmatpush1.msra.mxu0 0.0
    %70 = vmatprep.subr.mxu0 0.0
    %71 = vmatpush1.msra.mxu0 0.0
    %72 = vmatprep.subr.mxu0 0.0
    %73 = vmatpush1.msra.mxu0 0.0
    %74 = vmatprep.subr.mxu0 0.0
    %75 = vmatpush1.msra.mxu0 %v45
    %76 = vmatprep.subr.mxu0 0.0
    %77 = vmatpush1.msra.mxu0 %v44
    %78 = vmatprep.subr.mxu0 0.0
    %79 = vmatpush1.msra.mxu0 %v43
    %80 = vmatprep.subr.mxu0 0.0
    %81 = vmatpush1.msra.mxu0 %v42
    %82 = vmatprep.subr.mxu0 0.0
    %83 = vmatpush2.msra.mxu0 0.0
    %84 = vmatprep.subr.mxu0 0.0
    %85 = vmatpush2.msra.mxu0 0.0
    %86 = vmatprep.subr.mxu0 0.0
    %87 = vmatpush2.msra.mxu0 0.0
    %88 = vmatprep.subr.mxu0 0.0
    %89 = vmatpush2.msra.mxu0 0.0
    %90 = vmatprep.subr.mxu0 0.0
    %91 = vmatpush2.msra.mxu0 0.0
    %92 = vmatprep.subr.mxu0 0.0
    %93 = vmatpush2.msra.mxu0 0.0
    %94 = vmatprep.subr.mxu0 0.0
    %95 = vmatpush2.msra.mxu0 0.0
    %96 = vmatprep.subr.mxu0 0.0
    %97 = vmatpush2.msra.mxu0 0.0
    %98 = vmatprep.subr.mxu0 0.0
    %99 = vmatpush2.msra.mxu0 0.0
    %100 = vmatprep.subr.mxu0 0.0
    %101 = vmatpush2.msra.mxu0 0.0
    %102 = vmatprep.subr.mxu0 0.0
    %103 = vmatpush2.msra.mxu0 0.0
    %104 = vmatprep.subr.mxu0 0.0
    %105 = vmatpush2.msra.mxu0 0.0
    %106 = vmatprep.subr.mxu0 0.0
    %107 = vmatpush2.msra.mxu0 0.0
    %108 = vmatprep.subr.mxu0 0.0
    %109 = vmatpush2.msra.mxu0 0.0
    %110 = vmatprep.subr.mxu0 0.0
    %111 = vmatpush2.msra.mxu0 0.0
    %112 = vmatprep.subr.mxu0 0.0
    %113 = vmatpush2.msra.mxu0 0.0
    %114 = vmatprep.mubr.f32.mxu0 0.0
    %115 = vmatmul.mubr.f32.gmra.mxu0 %v48
    %v116 = vpop.f32.mrf.mxu0
    %v117 = vadd.f32 0.0, %v116
    %v118 = vpop.f32.mrf.mxu0
    %119 = vdwg.mxu0
    %v120 = vmul.f32 %v117, 0.0017677669
    %v121 = vld [vmem:[%s2] sm:$0x1]
    %v122 = vmul.f32 %v121, 0.01
    %v124 = vlaneseq
    %v125 = vshrl.u32 %v124, 7
    %v126 = vsub.s32 0, %v125
    %v127 = vrot.slane %v122, %v126
    %v129 = vadd.f32 %v120, %v127
    %130 = vst.msk [vmem:[#allocation7] sm:$0xff] %vm46, %v129
    // Predicated region
    $region22: #{tpu_custom_call.1} parent=1 // pred_check
      _
    $region23: #{tpu_custom_call.1} parent=1 // pred_check_branch
      %132 = sbr.rel (0) target = $region25
    $region24: #{tpu_custom_call.1} parent=1 // pred_region
      %s134 = ssub.s32 128, 128
      %135 = vsyncadd [#allocation4], %s134
      %s137 = sshll.u32 [#allocation7], 4
      %s138 = int_to_ptr.vmem [resolvable:$true] %s137
      %140 = dma.vmem_to_hbm [thread:$0]  %s138, 128, %s3, [#allocation4]
    $region25: #{tpu_custom_call.1} parent=1 // pred_fallthru
      _
    // Predicated region
    $region26: #{tpu_custom_call.1} parent=1 // pred_check
      _
    $region27: #{tpu_custom_call.1} parent=1 // pred_check_branch
      %142 = sbr.rel (0) target = $region29
    $region28: #{tpu_custom_call.1} parent=1 // pred_region
      %143 = dma.done [#allocation4], 128
    $region29: #{tpu_custom_call.1} parent=1 // pred_fallthru
      _
    %144 = vsyncpa [#allocation3], 1
    %145 = vsyncpa [#allocation6], 1
    %146 = vsyncpa [#allocation4], 1

</llo_original>
